<compile_context>
chip_gen: v7x
topology: tpu7x:2x2x1
jax: 0.10.0
libtpu: 0.0.40
codegen_flags: <defaults>
</compile_context>

<pallas_src>
import functools

import jax
import jax.numpy as jnp
from jax import lax
from jax.experimental import pallas as pl
from jax.experimental.pallas import tpu as pltpu

ENCODED_DIM = 2

_SUB_B = 128  # in-kernel row sub-tile (keeps sub_b x 256 f32 activations small)


def _round_up(x, m):
    return (x + m - 1) // m * m


def _encoder_kernel(x_ref,
                    w1_ref, b1_ref,
                    w2_ref, b2_ref,
                    w3_ref, b3_ref,
                    w4_ref, b4_ref,
                    o_ref,
                    *, sub_b, n_sub):
    """Fused 4-layer MLP over one (tb, D) batch tile.

    The tile is processed in n_sub sub-tiles of sub_b rows so the f32 hidden
    activations stay register/VMEM-cheap even when the outer DMA tile is large.
    All matmuls hit the MXU and accumulate in f32; bias-add + ReLU run in f32.
    """
    cdt = w1_ref.dtype  # matmul-input dtype: f32, or bf16 on the fast path

    # Biases are tiny (1, out); load them once per batch tile, not per sub-tile
    # (JAX does not CSE broadcast_in_dim, so in-loop loads would be re-emitted).
    b1 = b1_ref[...]
    b2 = b2_ref[...]
    b3 = b3_ref[...]
    b4 = b4_ref[...]

    def compute(r0):
        xs = x_ref[pl.ds(r0, sub_b), :].astype(cdt)

        h = jnp.dot(xs, w1_ref[...], preferred_element_type=jnp.float32) + b1
        h = jnp.maximum(h, 0.0).astype(cdt)

        h = jnp.dot(h, w2_ref[...], preferred_element_type=jnp.float32) + b2
        h = jnp.maximum(h, 0.0).astype(cdt)

        h = jnp.dot(h, w3_ref[...], preferred_element_type=jnp.float32) + b3
        h = jnp.maximum(h, 0.0).astype(cdt)

        out = jnp.dot(h, w4_ref[...], preferred_element_type=jnp.float32) + b4
        # TODO(synk): out_dim=2 -> masked 2/128-lane store. A transposed,
        # lane-dense output block is possible but the absolute byte savings are
        # negligible next to the input-side traffic, so we keep the simple store.
        o_ref[pl.ds(r0, sub_b), :] = out.astype(o_ref.dtype)

    if n_sub == 1:
        compute(0)
    else:
        def body(s, carry):
            compute(pl.multiple_of(s * sub_b, sub_b))
            return carry

        # Short fixed trip count -> unroll so the LLO scheduler sees all the
        # MXU pushes; fall back to a rolled loop if the tile is very tall.
        lax.fori_loop(0, n_sub, body, 0, unroll=(n_sub <= 8))


@functools.partial(jax.jit, static_argnames=("block_b", "matmul_dtype"))
def encoder_forward(x, params, *, block_b=512, matmul_dtype=jnp.float32):
    """x: (B, input_dim) float32. params: dict of w1..w4 (in,out), b1..b4 (1,out)."""
    B, D = x.shape
    out_dim = params["w4"].shape[1]

    # Cast weights once here (halves weight HBM/VMEM bytes in bf16 mode).
    ws = [params[f"w{i}"].astype(matmul_dtype) for i in range(1, 5)]
    bs = [params[f"b{i}"].astype(jnp.float32) for i in range(1, 5)]

    # ---- batch tiling ------------------------------------------------------
    tb = min(block_b, _round_up(B, 8))
    if B >= 16:
        # Ensure at least 2 batch tiles so dual-TC chips (v7x) both get work.
        tb = min(tb, _round_up(pl.cdiv(B, 2), 8))
    if tb >= _SUB_B:
        tb = _round_up(tb, _SUB_B)  # make the in-kernel sub-tiling exact
    sub_b = min(tb, _SUB_B)
    n_sub = tb // sub_b

    # Ragged last tile: no host-side pad copy of x; Pallas masks OOB rows on
    # writeback and their (garbage) values are never reduced across the batch.
    grid = (pl.cdiv(B, tb),)

    # Weights/biases: whole array resident in VMEM, no per-step pipelining.
    vmem_spec = pl.BlockSpec(memory_space=pltpu.MemorySpace.VMEM)

    kernel = functools.partial(_encoder_kernel, sub_b=sub_b, n_sub=n_sub)

    out = pl.pallas_call(
        kernel,
        out_shape=jax.ShapeDtypeStruct((B, out_dim), jnp.float32),
        grid_spec=pltpu.PrefetchScalarGridSpec(
            num_scalar_prefetch=0,
            grid=grid,
            in_specs=[
                pl.BlockSpec((tb, D), lambda i: (i, 0)),   # x batch tile
                vmem_spec, vmem_spec,                      # w1, b1
                vmem_spec, vmem_spec,                      # w2, b2
                vmem_spec, vmem_spec,                      # w3, b3
                vmem_spec, vmem_spec,                      # w4, b4
            ],
            out_specs=pl.BlockSpec((tb, out_dim), lambda i: (i, 0)),
        ),
        compiler_params=pltpu.CompilerParams(
            dimension_semantics=("parallel",),
            vmem_limit_bytes=48 * 1024 * 1024,
        ),
    )(x, ws[0], bs[0], ws[1], bs[1], ws[2], bs[2], ws[3], bs[3])

    return out


def init_encoder_params(key, input_dim, encoded_dim):
    """Deterministic init mimicking nn.Linear's U(-1/sqrt(fan_in), 1/sqrt(fan_in))."""
    dims = [input_dim, 256, 128, 64, encoded_dim]
    params = {}
    keys = jax.random.split(key, 2 * (len(dims) - 1))
    for layer in range(len(dims) - 1):
        fan_in, fan_out = dims[layer], dims[layer + 1]
        bound = 1.0 / jnp.sqrt(jnp.float32(fan_in))
        wk, bk = keys[2 * layer], keys[2 * layer + 1]
        params[f"w{layer + 1}"] = jax.random.uniform(
            wk, (fan_in, fan_out), jnp.float32, -bound, bound)
        params[f"b{layer + 1}"] = jax.random.uniform(
            bk, (1, fan_out), jnp.float32, -bound, bound)
    return params


def encoder_reference(x, params):
    """Pure-JAX reference matching the PyTorch forward."""
    h = jnp.maximum(x @ params["w1"] + params["b1"], 0.0)
    h = jnp.maximum(h @ params["w2"] + params["b2"], 0.0)
    h = jnp.maximum(h @ params["w3"] + params["b3"], 0.0)
    return h @ params["w4"] + params["b4"]


if __name__ == "__main__":
    key = jax.random.PRNGKey(0)
    xkey, pkey = jax.random.split(key)

    batch, input_dim = 8, 32
    x = jax.random.normal(xkey, (batch, input_dim), dtype=jnp.float32)
    params = init_encoder_params(pkey, input_dim, ENCODED_DIM)
    ref = encoder_reference(x, params)

    # f32 matmul path (exact semantics of the PyTorch module).
    out = jax.block_until_ready(encoder_forward(x, params))
    assert out.shape == (batch, ENCODED_DIM), out.shape
    assert jnp.allclose(out, ref, atol=1e-4, rtol=1e-4), "f32 mismatch vs reference"

    # bf16-MXU fast path (v6e/v7x); looser tolerance for the reduced precision.
    out_bf16 = jax.block_until_ready(
        encoder_forward(x, params, matmul_dtype=jnp.bfloat16))
    assert jnp.allclose(out_bf16, ref, atol=5e-2, rtol=5e-2), "bf16 mismatch vs reference"

    # Multi-tile + ragged-batch path (no host pad; in-kernel sub-tiling active).
    x_big = jax.random.normal(xkey, (300, input_dim), dtype=jnp.float32)
    out_big = jax.block_until_ready(encoder_forward(x_big, params))
    ref_big = encoder_reference(x_big, params)
    assert out_big.shape == (300, ENCODED_DIM), out_big.shape
    assert jnp.allclose(out_big, ref_big, atol=1e-4, rtol=1e-4), "ragged-batch mismatch"

    print("KERNEL_OK")
</pallas_src>

<mosaic_0001>
module attributes {stable_mosaic.version = 11 : i64} {
  func.func @_encoder_kernel(%arg0: i32, %arg1: memref<8x32xf32, #tpu.memory_space<vmem>>, %arg2: memref<32x256xf32, #tpu.memory_space<vmem>>, %arg3: memref<1x256xf32, #tpu.memory_space<vmem>>, %arg4: memref<256x128xf32, #tpu.memory_space<vmem>>, %arg5: memref<1x128xf32, #tpu.memory_space<vmem>>, %arg6: memref<128x64xf32, #tpu.memory_space<vmem>>, %arg7: memref<1x64xf32, #tpu.memory_space<vmem>>, %arg8: memref<64x2xf32, #tpu.memory_space<vmem>>, %arg9: memref<1x2xf32, #tpu.memory_space<vmem>>, %arg10: memref<8x2xf32, #tpu.memory_space<vmem>>) attributes {dimension_semantics = [#tpu.dimension_semantics<parallel>], iteration_bounds = array<i64: 1>, scalar_prefetch = 0 : i64, scratch_operands = 0 : i64, tpu.core_type = #tpu.core_type<tc>, window_params = [{transform_indices = @transform_0, window_bounds = array<i64: 8, 32>}, {pipeline_mode = #tpu.pipeline_mode<synchronous>, transform_indices = @transform_1, window_bounds = array<i64: 32, 256>}, {pipeline_mode = #tpu.pipeline_mode<synchronous>, transform_indices = @transform_2, window_bounds = array<i64: 1, 256>}, {pipeline_mode = #tpu.pipeline_mode<synchronous>, transform_indices = @transform_3, window_bounds = array<i64: 256, 128>}, {pipeline_mode = #tpu.pipeline_mode<synchronous>, transform_indices = @transform_4, window_bounds = array<i64: 1, 128>}, {pipeline_mode = #tpu.pipeline_mode<synchronous>, transform_indices = @transform_5, window_bounds = array<i64: 128, 64>}, {pipeline_mode = #tpu.pipeline_mode<synchronous>, transform_indices = @transform_6, window_bounds = array<i64: 1, 64>}, {pipeline_mode = #tpu.pipeline_mode<synchronous>, transform_indices = @transform_7, window_bounds = array<i64: 64, 2>}, {pipeline_mode = #tpu.pipeline_mode<synchronous>, transform_indices = @transform_8, window_bounds = array<i64: 1, 2>}, {transform_indices = @transform_9, window_bounds = array<i64: 8, 2>}]} {
    %c0 = arith.constant 0 : index
    %c0_0 = arith.constant 0 : index
    %0 = vector.load %arg3[%c0, %c0_0] : memref<1x256xf32, #tpu.memory_space<vmem>>, vector<1x256xf32>
    %c0_1 = arith.constant 0 : index
    %c0_2 = arith.constant 0 : index
    %1 = vector.load %arg5[%c0_1, %c0_2] : memref<1x128xf32, #tpu.memory_space<vmem>>, vector<1x128xf32>
    %c0_3 = arith.constant 0 : index
    %c0_4 = arith.constant 0 : index
    %2 = vector.load %arg7[%c0_3, %c0_4] : memref<1x64xf32, #tpu.memory_space<vmem>>, vector<1x64xf32>
    %c0_5 = arith.constant 0 : index
    %c0_6 = arith.constant 0 : index
    %3 = vector.load %arg9[%c0_5, %c0_6] : memref<1x2xf32, #tpu.memory_space<vmem>>, vector<1x2xf32>
    %c0_7 = arith.constant 0 : index
    %c0_8 = arith.constant 0 : index
    %4 = vector.load %arg1[%c0_7, %c0_8] : memref<8x32xf32, #tpu.memory_space<vmem>>, vector<8x32xf32>
    %c0_9 = arith.constant 0 : index
    %c0_10 = arith.constant 0 : index
    %5 = vector.load %arg2[%c0_9, %c0_10] : memref<32x256xf32, #tpu.memory_space<vmem>>, vector<32x256xf32>
    %cst = arith.constant dense<0.000000e+00> : vector<8x256xf32>
    %6 = tpu.matmul %4, %5, %cst {dimension_numbers = #tpu.dot_dimension_numbers<[1], [0], [0], [1], [0, 0, 1, 1], [], []>} : vector<8x32xf32>, vector<32x256xf32>, vector<8x256xf32> -> vector<8x256xf32>
    %7 = vector.broadcast %0 : vector<1x256xf32> to vector<8x256xf32>
    %8 = arith.addf %6, %7 : vector<8x256xf32>
    %cst_11 = arith.constant 0.000000e+00 : f32
    %9 = vector.broadcast %cst_11 : f32 to vector<8x256xf32>
    %10 = arith.maximumf %8, %9 : vector<8x256xf32>
    %c0_12 = arith.constant 0 : index
    %c0_13 = arith.constant 0 : index
    %11 = vector.load %arg4[%c0_12, %c0_13] : memref<256x128xf32, #tpu.memory_space<vmem>>, vector<256x128xf32>
    %cst_14 = arith.constant dense<0.000000e+00> : vector<8x128xf32>
    %12 = tpu.matmul %10, %11, %cst_14 {dimension_numbers = #tpu.dot_dimension_numbers<[1], [0], [0], [1], [0, 0, 1, 1], [], []>} : vector<8x256xf32>, vector<256x128xf32>, vector<8x128xf32> -> vector<8x128xf32>
    %13 = vector.broadcast %1 : vector<1x128xf32> to vector<8x128xf32>
    %14 = arith.addf %12, %13 : vector<8x128xf32>
    %cst_15 = arith.constant 0.000000e+00 : f32
    %15 = vector.broadcast %cst_15 : f32 to vector<8x128xf32>
    %16 = arith.maximumf %14, %15 : vector<8x128xf32>
    %c0_16 = arith.constant 0 : index
    %c0_17 = arith.constant 0 : index
    %17 = vector.load %arg6[%c0_16, %c0_17] : memref<128x64xf32, #tpu.memory_space<vmem>>, vector<128x64xf32>
    %cst_18 = arith.constant dense<0.000000e+00> : vector<8x64xf32>
    %18 = tpu.matmul %16, %17, %cst_18 {dimension_numbers = #tpu.dot_dimension_numbers<[1], [0], [0], [1], [0, 0, 1, 1], [], []>} : vector<8x128xf32>, vector<128x64xf32>, vector<8x64xf32> -> vector<8x64xf32>
    %19 = vector.broadcast %2 : vector<1x64xf32> to vector<8x64xf32>
    %20 = arith.addf %18, %19 : vector<8x64xf32>
    %cst_19 = arith.constant 0.000000e+00 : f32
    %21 = vector.broadcast %cst_19 : f32 to vector<8x64xf32>
    %22 = arith.maximumf %20, %21 : vector<8x64xf32>
    %c0_20 = arith.constant 0 : index
    %c0_21 = arith.constant 0 : index
    %23 = vector.load %arg8[%c0_20, %c0_21] : memref<64x2xf32, #tpu.memory_space<vmem>>, vector<64x2xf32>
    %cst_22 = arith.constant dense<0.000000e+00> : vector<8x2xf32>
    %24 = tpu.matmul %22, %23, %cst_22 {dimension_numbers = #tpu.dot_dimension_numbers<[1], [0], [0], [1], [0, 0, 1, 1], [], []>} : vector<8x64xf32>, vector<64x2xf32>, vector<8x2xf32> -> vector<8x2xf32>
    %25 = vector.broadcast %3 : vector<1x2xf32> to vector<8x2xf32>
    %26 = arith.addf %24, %25 : vector<8x2xf32>
    %c0_23 = arith.constant 0 : index
    %c0_24 = arith.constant 0 : index
    %27 = vector.load %arg10[%c0_23, %c0_24] : memref<8x2xf32, #tpu.memory_space<vmem>>, vector<8x2xf32>
    tpu.vector_store %arg10[%c0_23, %c0_24], %26 {strides = array<i32>} : memref<8x2xf32, #tpu.memory_space<vmem>>, vector<8x2xf32>,
    return
  }
  func.func @transform_0(%arg0: i32) -> (i32, i32) {
    %c0_i32 = arith.constant 0 : i32
    %c0_i32_0 = arith.constant 0 : i32
    return %arg0, %c0_i32 : i32, i32
  }
  func.func @transform_1(%arg0: i32) -> (i32, i32) {
    %c0_i32 = arith.constant 0 : i32
    %c0_i32_0 = arith.constant 0 : i32
    %c0_i32_1 = arith.constant 0 : i32
    return %c0_i32, %c0_i32_0 : i32, i32
  }
  func.func @transform_2(%arg0: i32) -> (i32, i32) {
    %c0_i32 = arith.constant 0 : i32
    %c0_i32_0 = arith.constant 0 : i32
    %c0_i32_1 = arith.constant 0 : i32
    return %c0_i32, %c0_i32_0 : i32, i32
  }
  func.func @transform_3(%arg0: i32) -> (i32, i32) {
    %c0_i32 = arith.constant 0 : i32
    %c0_i32_0 = arith.constant 0 : i32
    %c0_i32_1 = arith.constant 0 : i32
    return %c0_i32, %c0_i32_0 : i32, i32
  }
  func.func @transform_4(%arg0: i32) -> (i32, i32) {
    %c0_i32 = arith.constant 0 : i32
    %c0_i32_0 = arith.constant 0 : i32
    %c0_i32_1 = arith.constant 0 : i32
    return %c0_i32, %c0_i32_0 : i32, i32
  }
  func.func @transform_5(%arg0: i32) -> (i32, i32) {
    %c0_i32 = arith.constant 0 : i32
    %c0_i32_0 = arith.constant 0 : i32
    %c0_i32_1 = arith.constant 0 : i32
    return %c0_i32, %c0_i32_0 : i32, i32
  }
  func.func @transform_6(%arg0: i32) -> (i32, i32) {
    %c0_i32 = arith.constant 0 : i32
    %c0_i32_0 = arith.constant 0 : i32
    %c0_i32_1 = arith.constant 0 : i32
    return %c0_i32, %c0_i32_0 : i32, i32
  }
  func.func @transform_7(%arg0: i32) -> (i32, i32) {
    %c0_i32 = arith.constant 0 : i32
    %c0_i32_0 = arith.constant 0 : i32
    %c0_i32_1 = arith.constant 0 : i32
    return %c0_i32, %c0_i32_0 : i32, i32
  }
  func.func @transform_8(%arg0: i32) -> (i32, i32) {
    %c0_i32 = arith.constant 0 : i32
    %c0_i32_0 = arith.constant 0 : i32
    %c0_i32_1 = arith.constant 0 : i32
    return %c0_i32, %c0_i32_0 : i32, i32
  }
  func.func @transform_9(%arg0: i32) -> (i32, i32) {
    %c0_i32 = arith.constant 0 : i32
    %c0_i32_0 = arith.constant 0 : i32
    return %arg0, %c0_i32 : i32, i32
  }
}

</mosaic_0001>

<llo_original>
// kernel: encoder_forward.1
$region0: #{encoder_forward.1}
  #allocation0 [shape = 'u32[]', space=smem, size = 0x4, offset = 0x4, fixed_abs, tag = 'smem constant byte address 0x4 - core index']
  #allocation1 [shape = 'u32[144,128]{1,0:T(1,128)}', space=vmem, size = 0x12000, scoped, tag = 'internal scratch']
  %s0 = inlined_call_operand.vmem [shape: f32[8,32], index: 0, kind: input, shape index: {}]
  %s1 = inlined_call_operand.hbm [shape: f32[32,256], index: 1, kind: input, shape index: {}]
  %s2 = inlined_call_operand.vmem [shape: f32[1,256], index: 2, kind: input, shape index: {}]
  %s3 = inlined_call_operand.vmem [shape: f32[256,128], index: 3, kind: input, shape index: {}]
  %s4 = inlined_call_operand.vmem [shape: f32[1,128], index: 4, kind: input, shape index: {}]
  %s5 = inlined_call_operand.vmem [shape: f32[128,64], index: 5, kind: input, shape index: {}]
  %s6 = inlined_call_operand.vmem [shape: f32[1,64], index: 6, kind: input, shape index: {}]
  %s7 = inlined_call_operand.vmem [shape: f32[64,2], index: 7, kind: input, shape index: {}]
  %s8 = inlined_call_operand.vmem [shape: f32[1,2], index: 8, kind: input, shape index: {}]
  %s9 = inlined_call_operand.vmem [shape: f32[8,2], index: 9, kind: output, shape index: {}]
  %s10 = sld [smem:[#allocation0]]
  $region50: #{encoder_forward.1} parent=0
    _
  %s12 = ssub.s32 1, %s10
  %s13 = scalar_select 0, %s12, %s10
  $region1: #{encoder_forward.1} parent=0
    #allocation2 [shape = 'u8[32768]{0}', space=vmem, size = 0x8000, scoped, tag = 'input window, operand 1, single buffered']
    #allocation3 [shape = 's32[1]{0}', space=sflag, size = 0x4, scoped, tag = 'scoped memory for encoder_forward.1']
    %14 = vsyncpa [#allocation3], 0
    // Predicated region
    $region2: #{encoder_forward.1} parent=1 // pred_check
      _
    $region3: #{encoder_forward.1} parent=1 // pred_check_branch
      %16 = sbr.rel (0) target = $region5
    $region4: #{encoder_forward.1} parent=1 // pred_region
      _
    $region5: #{encoder_forward.1} parent=1 // pred_fallthru
      _
    // Predicated region
    $region6: #{encoder_forward.1} parent=1 // pred_check
      _
    $region7: #{encoder_forward.1} parent=1 // pred_check_branch
      %18 = sbr.rel (0) target = $region9
    $region8: #{encoder_forward.1} parent=1 // pred_region
      %s20 = ssub.s32 1024, 1024
      %21 = vsyncadd [#allocation3], %s20
      %s22 = sshll.u32 [#allocation2], 4
      %s23 = int_to_ptr.vmem [resolvable:$true] %s22
      %28 = dma.hbm_to_vmem [thread:$0]  %s1, 1024, %s23, [#allocation3], 256, 256, 16
    $region9: #{encoder_forward.1} parent=1 // pred_fallthru
      _
    // Predicated region
    $region10: #{encoder_forward.1} parent=1 // pred_check
      _
    $region11: #{encoder_forward.1} parent=1 // pred_check_branch
      %30 = sbr.rel (0) target = $region13
    $region12: #{encoder_forward.1} parent=1 // pred_region
      _
    $region13: #{encoder_forward.1} parent=1 // pred_fallthru
      _
    // Predicated region
    $region14: #{encoder_forward.1} parent=1 // pred_check
      _
    $region15: #{encoder_forward.1} parent=1 // pred_check_branch
      %32 = sbr.rel (0) target = $region17
    $region16: #{encoder_forward.1} parent=1 // pred_region
      _
    $region17: #{encoder_forward.1} parent=1 // pred_fallthru
      _
    // Predicated region
    $region18: #{encoder_forward.1} parent=1 // pred_check
      _
    $region19: #{encoder_forward.1} parent=1 // pred_check_branch
      %34 = sbr.rel (0) target = $region21
    $region20: #{encoder_forward.1} parent=1 // pred_region
      _
    $region21: #{encoder_forward.1} parent=1 // pred_fallthru
      _
    // Predicated region
    $region22: #{encoder_forward.1} parent=1 // pred_check
      _
    $region23: #{encoder_forward.1} parent=1 // pred_check_branch
      %36 = sbr.rel (0) target = $region25
    $region24: #{encoder_forward.1} parent=1 // pred_region
      _
    $region25: #{encoder_forward.1} parent=1 // pred_fallthru
      _
    // Predicated region
    $region26: #{encoder_forward.1} parent=1 // pred_check
      _
    $region27: #{encoder_forward.1} parent=1 // pred_check_branch
      %38 = sbr.rel (0) target = $region29
    $region28: #{encoder_forward.1} parent=1 // pred_region
      _
    $region29: #{encoder_forward.1} parent=1 // pred_fallthru
      _
    // Predicated region
    $region30: #{encoder_forward.1} parent=1 // pred_check
      _
    $region31: #{encoder_forward.1} parent=1 // pred_check_branch
      %40 = sbr.rel (0) target = $region33
    $region32: #{encoder_forward.1} parent=1 // pred_region
      _
    $region33: #{encoder_forward.1} parent=1 // pred_fallthru
      _
    // Predicated region
    $region34: #{encoder_forward.1} parent=1 // pred_check
      _
    $region35: #{encoder_forward.1} parent=1 // pred_check_branch
      %42 = sbr.rel (0) target = $region37
    $region36: #{encoder_forward.1} parent=1 // pred_region
      _
    $region37: #{encoder_forward.1} parent=1 // pred_fallthru
      _
    // Predicated region
    $region38: #{encoder_forward.1} parent=1 // pred_check
      _
    $region39: #{encoder_forward.1} parent=1 // pred_check_branch
      %44 = sbr.rel (0) target = $region41
    $region40: #{encoder_forward.1} parent=1 // pred_region
      %45 = dma.done [#allocation3], 1024
    $region41: #{encoder_forward.1} parent=1 // pred_fallthru
      _
    %v46 = vld [vmem:[%s2] sm:$0x3]
    %v47 = vld [vmem:[%s4] sm:$0x1]
    %v48 = vld [vmem:[%s6] sm:$0x1]
    %v49 = vld [vmem:[%s8] sm:$0x1]
    %v50 = vld [vmem:[%s0] sm:$0xff]
    %v51 = vld [vmem:[#allocation2] sm:$0xff]
    %v52 = vld [vmem:[#allocation2 + $0x8] sm:$0xff]
    %v53 = vld [vmem:[#allocation2 + $0x10] sm:$0xff]
    %v54 = vld [vmem:[#allocation2 + $0x18] sm:$0xff]
    %v55 = vld [vmem:[#allocation2 + $0x20] sm:$0xff]
    %v56 = vld [vmem:[#allocation2 + $0x28] sm:$0xff]
    %v57 = vld [vmem:[#allocation2 + $0x30] sm:$0xff]
    %v58 = vld [vmem:[#allocation2 + $0x38] sm:$0xff]
    %v60 = vlaneseq
    %v61 = vshrl.u32 %v60, 7
    %v62 = vsub.s32 0, %v61
    %v63 = vrot.slane %v46, %v62
    %v64 = vlaneseq
    %v65 = vshrl.u32 %v64, 7
    %v66 = vsub.s32 1, %v65
    %v67 = vrot.slane %v46, %v66
    %vm70 = vcmask 261120
    %v72 = vsel %vm70, %v50, 0
    %74 = vmatprep.subr.mxu0 %v52
    %75 = vmatpush1.msra.mxu0 %v51
    %76 = vmatprep.subr.mxu0 %v54
    %77 = vmatpush1.msra.mxu0 %v53
    %78 = vmatprep.subr.mxu0 %v56
    %79 = vmatpush1.msra.mxu0 %v55
    %80 = vmatprep.subr.mxu0 %v58
    %81 = vmatpush1.msra.mxu0 %v57
    %82 = vmatprep.subr.mxu0 0.0
    %83 = vmatpush1.msra.mxu0 0.0
    %84 = vmatprep.subr.mxu0 0.0
    %85 = vmatpush1.msra.mxu0 0.0
    %86 = vmatprep.subr.mxu0 0.0
    %87 = vmatpush1.msra.mxu0 0.0
    %88 = vmatprep.subr.mxu0 0.0
    %89 = vmatpush1.msra.mxu0 0.0
    %90 = vmatprep.subr.mxu0 0.0
    %91 = vmatpush1.msra.mxu0 0.0
    %92 = vmatprep.subr.mxu0 0.0
    %93 = vmatpush1.msra.mxu0 0.0
    %94 = vmatprep.subr.mxu0 0.0
    %95 = vmatpush1.msra.mxu0 0.0
    %96 = vmatprep.subr.mxu0 0.0
    %97 = vmatpush1.msra.mxu0 0.0
    %98 = vmatprep.subr.mxu0 0.0
    %99 = vmatpush1.msra.mxu0 0.0
    %100 = vmatprep.subr.mxu0 0.0
    %101 = vmatpush1.msra.mxu0 0.0
    %102 = vmatprep.subr.mxu0 0.0
    %103 = vmatpush1.msra.mxu0 0.0
    %104 = vmatprep.subr.mxu0 0.0
    %105 = vmatpush1.msra.mxu0 0.0
    %106 = vmatprep.subr.mxu0 0.0
    %107 = vmatpush1.msra.mxu0 0.0
    %108 = vmatprep.subr.mxu0 0.0
    %109 = vmatpush1.msra.mxu0 0.0
    %110 = vmatprep.subr.mxu0 0.0
    %111 = vmatpush1.msra.mxu0 0.0
    %112 = vmatprep.subr.mxu0 0.0
    %113 = vmatpush1.msra.mxu0 0.0
    %114 = vmatprep.subr.mxu0 0.0
    %115 = vmatpush1.msra.mxu0 0.0
    %116 = vmatprep.subr.mxu0 0.0
    %117 = vmatpush1.msra.mxu0 0.0
    %118 = vmatprep.subr.mxu0 0.0
    %119 = vmatpush1.msra.mxu0 0.0
    %120 = vmatprep.subr.mxu0 0.0
    %121 = vmatpush1.msra.mxu0 0.0
    %122 = vmatprep.subr.mxu0 0.0
    %123 = vmatpush1.msra.mxu0 0.0
    %124 = vmatprep.subr.mxu0 0.0
    %125 = vmatpush1.msra.mxu0 0.0
    %126 = vmatprep.subr.mxu0 0.0
    %127 = vmatpush1.msra.mxu0 0.0
    %128 = vmatprep.subr.mxu0 0.0
    %129 = vmatpush1.msra.mxu0 0.0
    %130 = vmatprep.subr.mxu0 0.0
    %131 = vmatpush1.msra.mxu0 0.0
    %132 = vmatprep.subr.mxu0 0.0
    %133 = vmatpush1.msra.mxu0 0.0
    %134 = vmatprep.subr.mxu0 0.0
    %135 = vmatpush1.msra.mxu0 0.0
    %136 = vmatprep.subr.mxu0 0.0
    %137 = vmatpush1.msra.mxu0 0.0
    %138 = vmatprep.mubr.f32.mxu0 0.0
    %139 = vmatmul.mubr.f32.gmra.mrb[0].mxu0 %v72
    %v140 = vpop.f32.mrb[0].mxu0
    %v141 = vadd.f32 %v63, %v140
    %v142 = vpop.f32.mrb[0].mxu0
    %v143 = vadd.f32 %v67, %v142
    %144 = vdwg.mxu0
    %v145 = vmax.f32 %v141, 0.0
    %v146 = vmax.f32 %v143, 0.0
    %v147 = vld [vmem:[%s3] sm:$0xff]
    %v148 = vld [vmem:[%s3 + $0x8] sm:$0xff]
    %v149 = vld [vmem:[%s3 + $0x10] sm:$0xff]
    %v150 = vld [vmem:[%s3 + $0x18] sm:$0xff]
    %v151 = vld [vmem:[%s3 + $0x20] sm:$0xff]
    %v152 = vld [vmem:[%s3 + $0x28] sm:$0xff]
    %v153 = vld [vmem:[%s3 + $0x30] sm:$0xff]
    %v154 = vld [vmem:[%s3 + $0x38] sm:$0xff]
    %v155 = vld [vmem:[%s3 + $0x40] sm:$0xff]
    %v156 = vld [vmem:[%s3 + $0x48] sm:$0xff]
    %v157 = vld [vmem:[%s3 + $0x50] sm:$0xff]
    %v158 = vld [vmem:[%s3 + $0x58] sm:$0xff]
    %v159 = vld [vmem:[%s3 + $0x60] sm:$0xff]
    %v160 = vld [vmem:[%s3 + $0x68] sm:$0xff]
    %v161 = vld [vmem:[%s3 + $0x70] sm:$0xff]
    %v162 = vld [vmem:[%s3 + $0x78] sm:$0xff]
    %v163 = vld [vmem:[%s3 + $0x80] sm:$0xff]
    %v164 = vld [vmem:[%s3 + $0x88] sm:$0xff]
    %v165 = vld [vmem:[%s3 + $0x90] sm:$0xff]
    %v166 = vld [vmem:[%s3 + $0x98] sm:$0xff]
    %v167 = vld [vmem:[%s3 + $0xa0] sm:$0xff]
    %v168 = vld [vmem:[%s3 + $0xa8] sm:$0xff]
    %v169 = vld [vmem:[%s3 + $0xb0] sm:$0xff]
    %v170 = vld [vmem:[%s3 + $0xb8] sm:$0xff]
    %v171 = vld [vmem:[%s3 + $0xc0] sm:$0xff]
    %v172 = vld [vmem:[%s3 + $0xc8] sm:$0xff]
    %v173 = vld [vmem:[%s3 + $0xd0] sm:$0xff]
    %v174 = vld [vmem:[%s3 + $0xd8] sm:$0xff]
    %v175 = vld [vmem:[%s3 + $0xe0] sm:$0xff]
    %v176 = vld [vmem:[%s3 + $0xe8] sm:$0xff]
    %v177 = vld [vmem:[%s3 + $0xf0] sm:$0xff]
    %v178 = vld [vmem:[%s3 + $0xf8] sm:$0xff]
    %v180 = vlaneseq
    %v181 = vshrl.u32 %v180, 7
    %v182 = vsub.s32 0, %v181
    %v183 = vrot.slane %v47, %v182
    %185 = vmatprep.subr.mxu0 0.0
    %186 = vmatpush1.msra.mxu0 %v147
    %187 = vmatprep.subr.mxu0 0.0
    %188 = vmatpush1.msra.mxu0 %v148
    %189 = vmatprep.subr.mxu0 0.0
    %190 = vmatpush1.msra.mxu0 %v149
    %191 = vmatprep.subr.mxu0 0.0
    %192 = vmatpush1.msra.mxu0 %v150
    %193 = vmatprep.subr.mxu0 0.0
    %194 = vmatpush1.msra.mxu0 %v151
    %195 = vmatprep.subr.mxu0 0.0
    %196 = vmatpush1.msra.mxu0 %v152
    %197 = vmatprep.subr.mxu0 0.0
    %198 = vmatpush1.msra.mxu0 %v153
    %199 = vmatprep.subr.mxu0 0.0
    %200 = vmatpush1.msra.mxu0 %v154
    %201 = vmatprep.subr.mxu0 0.0
    %202 = vmatpush1.msra.mxu0 %v155
    %203 = vmatprep.subr.mxu0 0.0
    %204 = vmatpush1.msra.mxu0 %v156
    %205 = vmatprep.subr.mxu0 0.0
    %206 = vmatpush1.msra.mxu0 %v157
    %207 = vmatprep.subr.mxu0 0.0
    %208 = vmatpush1.msra.mxu0 %v158
    %209 = vmatprep.subr.mxu0 0.0
    %210 = vmatpush1.msra.mxu0 %v159
    %211 = vmatprep.subr.mxu0 0.0
    %212 = vmatpush1.msra.mxu0 %v160
    %213 = vmatprep.subr.mxu0 0.0
    %214 = vmatpush1.msra.mxu0 %v161
    %215 = vmatprep.subr.mxu0 0.0
    %216 = vmatpush1.msra.mxu0 %v162
    %217 = vmatprep.subr.mxu0 0.0
    %218 = vmatpush1.msra.mxu0 %v163
    %219 = vmatprep.subr.mxu0 0.0
    %220 = vmatpush1.msra.mxu0 %v164
    %221 = vmatprep.subr.mxu0 0.0
    %222 = vmatpush1.msra.mxu0 %v165
    %223 = vmatprep.subr.mxu0 0.0
    %224 = vmatpush1.msra.mxu0 %v166
    %225 = vmatprep.subr.mxu0 0.0
    %226 = vmatpush1.msra.mxu0 %v167
    %227 = vmatprep.subr.mxu0 0.0
    %228 = vmatpush1.msra.mxu0 %v168
    %229 = vmatprep.subr.mxu0 0.0
    %230 = vmatpush1.msra.mxu0 %v169
    %231 = vmatprep.subr.mxu0 0.0
    %232 = vmatpush1.msra.mxu0 %v170
    %233 = vmatprep.subr.mxu0 0.0
    %234 = vmatpush1.msra.mxu0 %v171
    %235 = vmatprep.subr.mxu0 0.0
    %236 = vmatpush1.msra.mxu0 %v172
    %237 = vmatprep.subr.mxu0 0.0
    %238 = vmatpush1.msra.mxu0 %v173
    %239 = vmatprep.subr.mxu0 0.0
    %240 = vmatpush1.msra.mxu0 %v174
    %241 = vmatprep.subr.mxu0 0.0
    %242 = vmatpush1.msra.mxu0 %v175
    %243 = vmatprep.subr.mxu0 0.0
    %244 = vmatpush1.msra.mxu0 %v176
    %245 = vmatprep.subr.mxu0 0.0
    %246 = vmatpush1.msra.mxu0 %v177
    %247 = vmatprep.subr.mxu0 0.0
    %248 = vmatpush1.msra.mxu0 %v178
    %249 = vmatprep.mubr.f32.mxu0 %v146
    %250 = vmatmul.mubr.f32.gmra.mrb[0].mxu0 %v145
    %v251 = vpop.f32.mrb[0].mxu0
    %v252 = vadd.f32 %v183, %v251
    %v253 = vpop.f32.mrb[0].mxu0
    %254 = vdwg.mxu0
    %v255 = vmax.f32 %v252, 0.0
    %v256 = vld [vmem:[%s5] sm:$0xff]
    %v257 = vld [vmem:[%s5 + $0x8] sm:$0xff]
    %v258 = vld [vmem:[%s5 + $0x10] sm:$0xff]
    %v259 = vld [vmem:[%s5 + $0x18] sm:$0xff]
    %v260 = vld [vmem:[%s5 + $0x20] sm:$0xff]
    %v261 = vld [vmem:[%s5 + $0x28] sm:$0xff]
    %v262 = vld [vmem:[%s5 + $0x30] sm:$0xff]
    %v263 = vld [vmem:[%s5 + $0x38] sm:$0xff]
    %v264 = vld [vmem:[%s5 + $0x40] sm:$0xff]
    %v265 = vld [vmem:[%s5 + $0x48] sm:$0xff]
    %v266 = vld [vmem:[%s5 + $0x50] sm:$0xff]
    %v267 = vld [vmem:[%s5 + $0x58] sm:$0xff]
    %v268 = vld [vmem:[%s5 + $0x60] sm:$0xff]
    %v269 = vld [vmem:[%s5 + $0x68] sm:$0xff]
    %v270 = vld [vmem:[%s5 + $0x70] sm:$0xff]
    %v271 = vld [vmem:[%s5 + $0x78] sm:$0xff]
    %v273 = vlaneseq
    %v274 = vshrl.u32 %v273, 7
    %v275 = vsub.s32 0, %v274
    %v276 = vrot.slane %v48, %v275
    %278 = vmatprep.subr.mxu0 0.0
    %279 = vmatpush1.msra.mxu0 %v256
    %280 = vmatprep.subr.mxu0 0.0
    %281 = vmatpush1.msra.mxu0 %v257
    %282 = vmatprep.subr.mxu0 0.0
    %283 = vmatpush1.msra.mxu0 %v258
    %284 = vmatprep.subr.mxu0 0.0
    %285 = vmatpush1.msra.mxu0 %v259
    %286 = vmatprep.subr.mxu0 0.0
    %287 = vmatpush1.msra.mxu0 %v260
    %288 = vmatprep.subr.mxu0 0.0
    %289 = vmatpush1.msra.mxu0 %v261
    %290 = vmatprep.subr.mxu0 0.0
    %291 = vmatpush1.msra.mxu0 %v262
    %292 = vmatprep.subr.mxu0 0.0
    %293 = vmatpush1.msra.mxu0 %v263
    %294 = vmatprep.subr.mxu0 0.0
    %295 = vmatpush1.msra.mxu0 %v264
    %296 = vmatprep.subr.mxu0 0.0
    %297 = vmatpush1.msra.mxu0 %v265
    %298 = vmatprep.subr.mxu0 0.0
    %299 = vmatpush1.msra.mxu0 %v266
    %300 = vmatprep.subr.mxu0 0.0
    %301 = vmatpush1.msra.mxu0 %v267
    %302 = vmatprep.subr.mxu0 0.0
    %303 = vmatpush1.msra.mxu0 %v268
    %304 = vmatprep.subr.mxu0 0.0
    %305 = vmatpush1.msra.mxu0 %v269
    %306 = vmatprep.subr.mxu0 0.0
    %307 = vmatpush1.msra.mxu0 %v270
    %308 = vmatprep.subr.mxu0 0.0
    %309 = vmatpush1.msra.mxu0 %v271
    %310 = vmatprep.subr.mxu0 0.0
    %311 = vmatpush1.msra.mxu0 0.0
    %312 = vmatprep.subr.mxu0 0.0
    %313 = vmatpush1.msra.mxu0 0.0
    %314 = vmatprep.subr.mxu0 0.0
    %315 = vmatpush1.msra.mxu0 0.0
    %316 = vmatprep.subr.mxu0 0.0
    %317 = vmatpush1.msra.mxu0 0.0
    %318 = vmatprep.subr.mxu0 0.0
    %319 = vmatpush1.msra.mxu0 0.0
    %320 = vmatprep.subr.mxu0 0.0
    %321 = vmatpush1.msra.mxu0 0.0
    %322 = vmatprep.subr.mxu0 0.0
    %323 = vmatpush1.msra.mxu0 0.0
    %324 = vmatprep.subr.mxu0 0.0
    %325 = vmatpush1.msra.mxu0 0.0
    %326 = vmatprep.subr.mxu0 0.0
    %327 = vmatpush1.msra.mxu0 0.0
    %328 = vmatprep.subr.mxu0 0.0
    %329 = vmatpush1.msra.mxu0 0.0
    %330 = vmatprep.subr.mxu0 0.0
    %331 = vmatpush1.msra.mxu0 0.0
    %332 = vmatprep.subr.mxu0 0.0
    %333 = vmatpush1.msra.mxu0 0.0
    %334 = vmatprep.subr.mxu0 0.0
    %335 = vmatpush1.msra.mxu0 0.0
    %336 = vmatprep.subr.mxu0 0.0
    %337 = vmatpush1.msra.mxu0 0.0
    %338 = vmatprep.subr.mxu0 0.0
    %339 = vmatpush1.msra.mxu0 0.0
    %340 = vmatprep.subr.mxu0 0.0
    %341 = vmatpush1.msra.mxu0 0.0
    %342 = vmatprep.mubr.f32.mxu0 0.0
    %343 = vmatmul.mubr.f32.gmra.mrb[0].mxu0 %v255
    %v344 = vpop.f32.mrb[0].mxu0
    %v345 = vadd.f32 %v276, %v344
    %v346 = vpop.f32.mrb[0].mxu0
    %347 = vdwg.mxu0
    %v348 = vmax.f32 %v345, 0.0
    %v349 = vld [vmem:[%s7] sm:$0xff]
    %v350 = vld [vmem:[%s7 + $0x8] sm:$0xff]
    %v351 = vld [vmem:[%s7 + $0x10] sm:$0xff]
    %v352 = vld [vmem:[%s7 + $0x18] sm:$0xff]
    %v353 = vld [vmem:[%s7 + $0x20] sm:$0xff]
    %v354 = vld [vmem:[%s7 + $0x28] sm:$0xff]
    %v355 = vld [vmem:[%s7 + $0x30] sm:$0xff]
    %v356 = vld [vmem:[%s7 + $0x38] sm:$0xff]
    %v358 = vlaneseq
    %v359 = vshrl.u32 %v358, 7
    %v360 = vsub.s32 0, %v359
    %v361 = vrot.slane %v49, %v360
    %vm363 = vcmask 523264
    %v365 = vsel %vm363, %v348, 0
    %367 = vmatprep.subr.mxu0 0.0
    %368 = vmatpush1.msra.mxu0 %v349
    %369 = vmatprep.subr.mxu0 0.0
    %370 = vmatpush1.msra.mxu0 %v350
    %371 = vmatprep.subr.mxu0 0.0
    %372 = vmatpush1.msra.mxu0 %v351
    %373 = vmatprep.subr.mxu0 0.0
    %374 = vmatpush1.msra.mxu0 %v352
    %375 = vmatprep.subr.mxu0 0.0
    %376 = vmatpush1.msra.mxu0 %v353
    %377 = vmatprep.subr.mxu0 0.0
    %378 = vmatpush1.msra.mxu0 %v354
    %379 = vmatprep.subr.mxu0 0.0
    %380 = vmatpush1.msra.mxu0 %v355
    %381 = vmatprep.subr.mxu0 0.0
    %382 = vmatpush1.msra.mxu0 %v356
    %383 = vmatprep.subr.mxu0 0.0
    %384 = vmatpush1.msra.mxu0 0.0
    %385 = vmatprep.subr.mxu0 0.0
    %386 = vmatpush1.msra.mxu0 0.0
    %387 = vmatprep.subr.mxu0 0.0
    %388 = vmatpush1.msra.mxu0 0.0
    %389 = vmatprep.subr.mxu0 0.0
    %390 = vmatpush1.msra.mxu0 0.0
    %391 = vmatprep.subr.mxu0 0.0
    %392 = vmatpush1.msra.mxu0 0.0
    %393 = vmatprep.subr.mxu0 0.0
    %394 = vmatpush1.msra.mxu0 0.0
    %395 = vmatprep.subr.mxu0 0.0
    %396 = vmatpush1.msra.mxu0 0.0
    %397 = vmatprep.subr.mxu0 0.0
    %398 = vmatpush1.msra.mxu0 0.0
    %399 = vmatprep.subr.mxu0 0.0
    %400 = vmatpush1.msra.mxu0 0.0
    %401 = vmatprep.subr.mxu0 0.0
    %402 = vmatpush1.msra.mxu0 0.0
    %403 = vmatprep.subr.mxu0 0.0
    %404 = vmatpush1.msra.mxu0 0.0
    %405 = vmatprep.subr.mxu0 0.0
    %406 = vmatpush1.msra.mxu0 0.0
    %407 = vmatprep.subr.mxu0 0.0
    %408 = vmatpush1.msra.mxu0 0.0
    %409 = vmatprep.subr.mxu0 0.0
    %410 = vmatpush1.msra.mxu0 0.0
    %411 = vmatprep.subr.mxu0 0.0
    %412 = vmatpush1.msra.mxu0 0.0
    %413 = vmatprep.subr.mxu0 0.0
    %414 = vmatpush1.msra.mxu0 0.0
    %415 = vmatprep.subr.mxu0 0.0
    %416 = vmatpush1.msra.mxu0 0.0
    %417 = vmatprep.subr.mxu0 0.0
    %418 = vmatpush1.msra.mxu0 0.0
    %419 = vmatprep.subr.mxu0 0.0
    %420 = vmatpush1.msra.mxu0 0.0
    %421 = vmatprep.subr.mxu0 0.0
    %422 = vmatpush1.msra.mxu0 0.0
    %423 = vmatprep.subr.mxu0 0.0
    %424 = vmatpush1.msra.mxu0 0.0
    %425 = vmatprep.subr.mxu0 0.0
    %426 = vmatpush1.msra.mxu0 0.0
    %427 = vmatprep.subr.mxu0 0.0
    %428 = vmatpush1.msra.mxu0 0.0
    %429 = vmatprep.subr.mxu0 0.0
    %430 = vmatpush1.msra.mxu0 0.0
    %431 = vmatprep.mubr.f32.mxu0 0.0
    %432 = vmatmul.mubr.f32.gmra.mrb[0].mxu0 %v365
    %v433 = vpop.f32.mrb[0].mxu0
    %v434 = vadd.f32 %v361, %v433
    %v435 = vpop.f32.mrb[0].mxu0
    %436 = vdwg.mxu0
    %vm437 = vcmask 15360
    %438 = vst.msk [vmem:[%s9] sm:$0xff] %vm437, %v434
    // Predicated region
    $region42: #{encoder_forward.1} parent=1 // pred_check
      _
    $region43: #{encoder_forward.1} parent=1 // pred_check_branch
      %440 = sbr.rel (0) target = $region45
    $region44: #{encoder_forward.1} parent=1 // pred_region
      _
    $region45: #{encoder_forward.1} parent=1 // pred_fallthru
      _
    // Predicated region
    $region46: #{encoder_forward.1} parent=1 // pred_check
      _
    $region47: #{encoder_forward.1} parent=1 // pred_check_branch
      %442 = sbr.rel (0) target = $region49
    $region48: #{encoder_forward.1} parent=1 // pred_region
      _
    $region49: #{encoder_forward.1} parent=1 // pred_fallthru
      _
    %443 = vsyncpa [#allocation3], 1

</llo_original>
